<compile_context>
chip_gen: v6e
topology: v6e:2x2x1
jax: 0.10.0
libtpu: 0.0.40
codegen_flags: <defaults>
</compile_context>

<pallas_src>
import jax
import jax.numpy as jnp
from jax.experimental import pallas as pl
from jax.experimental.pallas import tpu as pltpu


def _round_up(v, m):
    return (v + m - 1) // m * m


def _gcnn_kernel(x_ref, t1_ref, b1_ref, t2_ref, b2_ref,
                 fc1_w_ref, fc1_b_ref, mask_ref, fc2_w_ref, fc2_b_ref, out_ref):
    """Fused forward on one E-block.  Everything is a plain MXU matmul.

    x_ref:     (Eb, G*N)        flattened input, col index = g*N + n (PyTorch NCW reshape)
    t1_ref:    (G*N, C1*N)      conv1 as a banded (Toeplitz) matrix, padding zeros baked in
    b1_ref:    (1, C1*N)
    t2_ref:    (C1*N, C2*N)     conv2 banded matrix
    b2_ref:    (1, C2*N)
    fc1_w_ref: (C2*N, Hp)       fc1.weight.T, columns zero-padded to Hp (multiple of 128)
    fc1_b_ref: (1, Hp)
    mask_ref:  (Eb, Hp)         dropout keep-mask pre-scaled by 1/(1-p), zero-padded cols
    fc2_w_ref: (Hp, Op)         fc2.weight.T zero-padded to (Hp, Op), Op multiple of 128
    fc2_b_ref: (1, Op)
    out_ref:   (Eb, Op)         lane-dense output; wrapper slices [:, :out_dim]
    """
    cdt = t1_ref.dtype  # compute dtype for MXU operands (f32 or bf16); acc stays f32

    x = x_ref[...].astype(cdt)
    h1 = jnp.maximum(
        jnp.dot(x, t1_ref[...], preferred_element_type=jnp.float32) + b1_ref[...], 0.0)
    h2 = jnp.maximum(
        jnp.dot(h1.astype(cdt), t2_ref[...], preferred_element_type=jnp.float32)
        + b2_ref[...], 0.0)
    z1 = jnp.maximum(
        jnp.dot(h2.astype(cdt), fc1_w_ref[...], preferred_element_type=jnp.float32)
        + fc1_b_ref[...], 0.0)
    z1 = z1 * mask_ref[...]  # dropout (keep-mask already scaled by 1/(1-p)); f32 elementwise
    out_ref[...] = (
        jnp.dot(z1.astype(cdt), fc2_w_ref[...], preferred_element_type=jnp.float32)
        + fc2_b_ref[...])


def _conv1d_band_matrix(w, n):
    """Conv1d weight (Cout, Cin, K), stride 1, 'same' padding -> (Cin*N, Cout*N) matrix.

    T[ci*N + m, co*N + j] = w[co, ci, m - j + K//2] when the tap is in range, else 0,
    so that (x.reshape(E, Cin*N) @ T) equals the NCW conv output flattened as co*N + j.
    Boundary zeros (padding) are baked into the matrix.
    """
    cout, cin, k = w.shape
    m_idx = jnp.arange(n)[:, None]
    j_idx = jnp.arange(n)[None, :]
    d = m_idx - j_idx + (k // 2)                      # tap index
    valid = (d >= 0) & (d <= k - 1)
    d_c = jnp.clip(d, 0, k - 1)
    taps = jnp.transpose(w, (1, 0, 2))                # (Cin, Cout, K)
    band = jnp.where(valid[None, None, :, :], taps[:, :, d_c], 0.0)  # (Cin, Cout, N, N)
    return jnp.transpose(band, (0, 2, 1, 3)).reshape(cin * n, cout * n)


def gcnn_prepare_params(params, *, dtype=jnp.float32):
    """One-time layout plumbing (hoisted out of the per-call path).

    Set dtype=jnp.bfloat16 on v6e/v7x for 2x MXU throughput and half the VMEM
    footprint (accumulation and elementwise stay f32); keep f32 on v5e.
    """
    w1, b1, w2, b2, fc1_w, fc1_b, fc2_w, fc2_b = params
    c1 = w1.shape[0]
    c2 = w2.shape[0]
    hidden, flat_dim = fc1_w.shape
    out_dim = fc2_w.shape[0]
    n = flat_dim // c2

    t1 = _conv1d_band_matrix(w1, n)                   # (G*N,  C1*N)
    t2 = _conv1d_band_matrix(w2, n)                   # (C1*N, C2*N)
    b1f = jnp.repeat(b1, n).reshape(1, c1 * n).astype(jnp.float32)
    b2f = jnp.repeat(b2, n).reshape(1, c2 * n).astype(jnp.float32)

    h_pad = _round_up(hidden, 128)
    o_pad = _round_up(out_dim, 128)

    fc1_wt = jnp.zeros((flat_dim, h_pad), jnp.float32).at[:, :hidden].set(fc1_w.T)
    fc1_bf = jnp.zeros((1, h_pad), jnp.float32).at[:, :hidden].set(fc1_b)
    fc2_wt = jnp.zeros((h_pad, o_pad), jnp.float32).at[:hidden, :out_dim].set(fc2_w.T)
    fc2_bf = jnp.zeros((1, o_pad), jnp.float32).at[:, :out_dim].set(fc2_b)

    cast = lambda a: a.astype(dtype)
    return (cast(t1), b1f, cast(t2), b2f, cast(fc1_wt), fc1_bf, cast(fc2_wt), fc2_bf,
            int(out_dim), int(hidden))


def gcnn_forward(x, prepped, drop_mask, *, e_block=512):
    """x: (E, G, N) exactly like the PyTorch module (NCW).

    prepped = gcnn_prepare_params(params); drop_mask: (E, hidden) keep-mask / (1-p).
    """
    t1, b1f, t2, b2f, fc1_wt, fc1_bf, fc2_wt, fc2_bf, out_dim, hidden = prepped
    e = x.shape[0]
    gn, c1n = t1.shape
    c2n = t2.shape[1]
    h_pad = fc1_wt.shape[1]
    o_pad = fc2_wt.shape[1]

    # PyTorch NCW reshape already yields the col order g*N + n that T1 expects.
    x_flat = jnp.reshape(x, (e, gn)).astype(jnp.float32)
    mask = drop_mask.astype(jnp.float32)

    # E-block: multiple of 8 sublanes; weights stay VMEM-resident across grid steps.
    e_block = max(8, min(_round_up(e, 8), _round_up(int(e_block), 8)))
    n_blocks = pl.cdiv(e, e_block)
    e_padded = n_blocks * e_block
    x_flat = jnp.pad(x_flat, ((0, e_padded - e), (0, 0)))
    mask = jnp.pad(mask, ((0, e_padded - e), (0, h_pad - hidden)))

    const = lambda a: pl.BlockSpec(a.shape, lambda i: (0, 0))

    # Explicit VMEM budget: resident weights + double-buffered streamed blocks + slack.
    weight_bytes = sum(int(a.size) * a.dtype.itemsize
                       for a in (t1, b1f, t2, b2f, fc1_wt, fc1_bf, fc2_wt, fc2_bf))
    stream_bytes = 2 * e_block * (gn + h_pad + o_pad) * 4
    live_bytes = e_block * (c1n + c2n + h_pad) * 4
    vmem_limit = int(min(60 * 2 ** 20,
                         max(16 * 2 ** 20, 2 * weight_bytes + 2 * stream_bytes + live_bytes)))

    out = pl.pallas_call(
        _gcnn_kernel,
        out_shape=jax.ShapeDtypeStruct((e_padded, o_pad), jnp.float32),
        grid=(n_blocks,),
        in_specs=[
            pl.BlockSpec((e_block, gn), lambda i: (i, 0)),     # x (streamed per E-block)
            const(t1), const(b1f),                              # conv1 Toeplitz + bias
            const(t2), const(b2f),                              # conv2 Toeplitz + bias
            const(fc1_wt), const(fc1_bf),                       # fc1
            pl.BlockSpec((e_block, h_pad), lambda i: (i, 0)),   # dropout keep-mask
            const(fc2_wt), const(fc2_bf),                       # fc2
        ],
        out_specs=pl.BlockSpec((e_block, o_pad), lambda i: (i, 0)),
        compiler_params=pltpu.CompilerParams(
            dimension_semantics=("parallel",),                  # v7x: split E across 2 TCs
            vmem_limit_bytes=vmem_limit),
    )(x_flat, t1, b1f, t2, b2f, fc1_wt, fc1_bf, mask, fc2_wt, fc2_bf)

    return out[:e, :out_dim]


def gcnn_reference(x, params, drop_mask):
    """Plain-JAX reference with PyTorch semantics (NCW conv, C*N flatten)."""
    w1, b1, w2, b2, fc1_w, fc1_b, fc2_w, fc2_b = params
    dn = ('NCH', 'OIH', 'NCH')
    h = jax.lax.conv_general_dilated(x, w1, (1,), ((1, 1),), dimension_numbers=dn)
    h = jax.nn.relu(h + b1[None, :, None])
    h = jax.lax.conv_general_dilated(h, w2, (1,), ((1, 1),), dimension_numbers=dn)
    h = jax.nn.relu(h + b2[None, :, None])
    flat = h.reshape(h.shape[0], -1)
    z = jax.nn.relu(flat @ fc1_w.T + fc1_b)
    z = z * drop_mask
    return z @ fc2_w.T + fc2_b


if __name__ == "__main__":
    # E edges, G graphlet size (= num_channels), N node embedding size (= input_size)
    E, G, N = 8, 4, 16
    hidden, out_dim = 32, 8
    p_drop = 0.5

    key = jax.random.PRNGKey(0)
    keys = jax.random.split(key, 10)
    x = jax.random.normal(keys[0], (E, G, N), jnp.float32)
    # Deterministic synthetic parameters matching nn.Module shapes.
    w1 = jax.random.normal(keys[1], (16, G, 3), jnp.float32) * 0.2    # conv1.weight
    b1 = jax.random.normal(keys[2], (16,), jnp.float32) * 0.1         # conv1.bias
    w2 = jax.random.normal(keys[3], (32, 16, 3), jnp.float32) * 0.1   # conv2.weight
    b2 = jax.random.normal(keys[4], (32,), jnp.float32) * 0.1         # conv2.bias
    fc1_w = jax.random.normal(keys[5], (hidden, 32 * N), jnp.float32) * 0.05
    fc1_b = jax.random.normal(keys[6], (hidden,), jnp.float32) * 0.1
    fc2_w = jax.random.normal(keys[7], (out_dim, hidden), jnp.float32) * 0.1
    fc2_b = jax.random.normal(keys[8], (out_dim,), jnp.float32) * 0.1
    params = (w1, b1, w2, b2, fc1_w, fc1_b, fc2_w, fc2_b)

    # F.dropout(training=True): Bernoulli keep-mask scaled by 1/(1-p).
    # TODO(synk): torch's RNG stream is not reproduced; the keep-mask is drawn with JAX
    # RNG outside the kernel (could move in-kernel via pltpu.prng_random_bits + SMEM seed).
    keep = jax.random.bernoulli(keys[9], 1.0 - p_drop, (E, hidden))
    drop_mask = keep.astype(jnp.float32) / (1.0 - p_drop)

    prepped = jax.tree.map(jax.block_until_ready, gcnn_prepare_params(params))

    out = jax.block_until_ready(gcnn_forward(x, prepped, drop_mask))
    ref = jax.block_until_ready(gcnn_reference(x, params, drop_mask))
    assert out.shape == (E, out_dim)
    max_err = float(jnp.max(jnp.abs(out - ref)))
    if not jnp.allclose(out, ref, atol=5e-4, rtol=5e-4):
        raise SystemExit("mismatch: max abs err %e" % max_err)
    print("KERNEL_OK")
</pallas_src>

<mosaic_0001>
module attributes {stable_mosaic.version = 11 : i64} {
  func.func @_gcnn_kernel(%arg0: i32, %arg1: memref<8x64xf32, #tpu.memory_space<vmem>>, %arg2: memref<64x256xf32, #tpu.memory_space<vmem>>, %arg3: memref<1x256xf32, #tpu.memory_space<vmem>>, %arg4: memref<256x512xf32, #tpu.memory_space<vmem>>, %arg5: memref<1x512xf32, #tpu.memory_space<vmem>>, %arg6: memref<512x128xf32, #tpu.memory_space<vmem>>, %arg7: memref<1x128xf32, #tpu.memory_space<vmem>>, %arg8: memref<8x128xf32, #tpu.memory_space<vmem>>, %arg9: memref<128x128xf32, #tpu.memory_space<vmem>>, %arg10: memref<1x128xf32, #tpu.memory_space<vmem>>, %arg11: memref<8x128xf32, #tpu.memory_space<vmem>>) attributes {dimension_semantics = [#tpu.dimension_semantics<parallel>], iteration_bounds = array<i64: 1>, scalar_prefetch = 0 : i64, scratch_operands = 0 : i64, tpu.core_type = #tpu.core_type<tc>, window_params = [{transform_indices = @transform_0, window_bounds = array<i64: 8, 64>}, {pipeline_mode = #tpu.pipeline_mode<synchronous>, transform_indices = @transform_1, window_bounds = array<i64: 64, 256>}, {pipeline_mode = #tpu.pipeline_mode<synchronous>, transform_indices = @transform_2, window_bounds = array<i64: 1, 256>}, {pipeline_mode = #tpu.pipeline_mode<synchronous>, transform_indices = @transform_3, window_bounds = array<i64: 256, 512>}, {pipeline_mode = #tpu.pipeline_mode<synchronous>, transform_indices = @transform_4, window_bounds = array<i64: 1, 512>}, {pipeline_mode = #tpu.pipeline_mode<synchronous>, transform_indices = @transform_5, window_bounds = array<i64: 512, 128>}, {pipeline_mode = #tpu.pipeline_mode<synchronous>, transform_indices = @transform_6, window_bounds = array<i64: 1, 128>}, {transform_indices = @transform_7, window_bounds = array<i64: 8, 128>}, {pipeline_mode = #tpu.pipeline_mode<synchronous>, transform_indices = @transform_8, window_bounds = array<i64: 128, 128>}, {pipeline_mode = #tpu.pipeline_mode<synchronous>, transform_indices = @transform_9, window_bounds = array<i64: 1, 128>}, {transform_indices = @transform_10, window_bounds = array<i64: 8, 128>}]} {
    %c0 = arith.constant 0 : index
    %c0_0 = arith.constant 0 : index
    %0 = vector.load %arg1[%c0, %c0_0] : memref<8x64xf32, #tpu.memory_space<vmem>>, vector<8x64xf32>
    %c0_1 = arith.constant 0 : index
    %c0_2 = arith.constant 0 : index
    %1 = vector.load %arg2[%c0_1, %c0_2] : memref<64x256xf32, #tpu.memory_space<vmem>>, vector<64x256xf32>
    %cst = arith.constant dense<0.000000e+00> : vector<8x256xf32>
    %2 = tpu.matmul %0, %1, %cst {dimension_numbers = #tpu.dot_dimension_numbers<[1], [0], [0], [1], [0, 0, 1, 1], [], []>} : vector<8x64xf32>, vector<64x256xf32>, vector<8x256xf32> -> vector<8x256xf32>
    %c0_3 = arith.constant 0 : index
    %c0_4 = arith.constant 0 : index
    %3 = vector.load %arg3[%c0_3, %c0_4] : memref<1x256xf32, #tpu.memory_space<vmem>>, vector<1x256xf32>
    %4 = vector.broadcast %3 : vector<1x256xf32> to vector<8x256xf32>
    %5 = arith.addf %2, %4 : vector<8x256xf32>
    %cst_5 = arith.constant 0.000000e+00 : f32
    %6 = vector.broadcast %cst_5 : f32 to vector<8x256xf32>
    %7 = arith.maximumf %5, %6 : vector<8x256xf32>
    %c0_6 = arith.constant 0 : index
    %c0_7 = arith.constant 0 : index
    %8 = vector.load %arg4[%c0_6, %c0_7] : memref<256x512xf32, #tpu.memory_space<vmem>>, vector<256x512xf32>
    %cst_8 = arith.constant dense<0.000000e+00> : vector<8x512xf32>
    %9 = tpu.matmul %7, %8, %cst_8 {dimension_numbers = #tpu.dot_dimension_numbers<[1], [0], [0], [1], [0, 0, 1, 1], [], []>} : vector<8x256xf32>, vector<256x512xf32>, vector<8x512xf32> -> vector<8x512xf32>
    %c0_9 = arith.constant 0 : index
    %c0_10 = arith.constant 0 : index
    %10 = vector.load %arg5[%c0_9, %c0_10] : memref<1x512xf32, #tpu.memory_space<vmem>>, vector<1x512xf32>
    %11 = vector.broadcast %10 : vector<1x512xf32> to vector<8x512xf32>
    %12 = arith.addf %9, %11 : vector<8x512xf32>
    %cst_11 = arith.constant 0.000000e+00 : f32
    %13 = vector.broadcast %cst_11 : f32 to vector<8x512xf32>
    %14 = arith.maximumf %12, %13 : vector<8x512xf32>
    %c0_12 = arith.constant 0 : index
    %c0_13 = arith.constant 0 : index
    %15 = vector.load %arg6[%c0_12, %c0_13] : memref<512x128xf32, #tpu.memory_space<vmem>>, vector<512x128xf32>
    %cst_14 = arith.constant dense<0.000000e+00> : vector<8x128xf32>
    %16 = tpu.matmul %14, %15, %cst_14 {dimension_numbers = #tpu.dot_dimension_numbers<[1], [0], [0], [1], [0, 0, 1, 1], [], []>} : vector<8x512xf32>, vector<512x128xf32>, vector<8x128xf32> -> vector<8x128xf32>
    %c0_15 = arith.constant 0 : index
    %c0_16 = arith.constant 0 : index
    %17 = vector.load %arg7[%c0_15, %c0_16] : memref<1x128xf32, #tpu.memory_space<vmem>>, vector<1x128xf32>
    %18 = vector.broadcast %17 : vector<1x128xf32> to vector<8x128xf32>
    %19 = arith.addf %16, %18 : vector<8x128xf32>
    %cst_17 = arith.constant 0.000000e+00 : f32
    %20 = vector.broadcast %cst_17 : f32 to vector<8x128xf32>
    %21 = arith.maximumf %19, %20 : vector<8x128xf32>
    %c0_18 = arith.constant 0 : index
    %c0_19 = arith.constant 0 : index
    %22 = vector.load %arg8[%c0_18, %c0_19] : memref<8x128xf32, #tpu.memory_space<vmem>>, vector<8x128xf32>
    %23 = arith.mulf %21, %22 : vector<8x128xf32>
    %c0_20 = arith.constant 0 : index
    %c0_21 = arith.constant 0 : index
    %24 = vector.load %arg9[%c0_20, %c0_21] : memref<128x128xf32, #tpu.memory_space<vmem>>, vector<128x128xf32>
    %cst_22 = arith.constant dense<0.000000e+00> : vector<8x128xf32>
    %25 = tpu.matmul %23, %24, %cst_22 {dimension_numbers = #tpu.dot_dimension_numbers<[1], [0], [0], [1], [0, 0, 1, 1], [], []>} : vector<8x128xf32>, vector<128x128xf32>, vector<8x128xf32> -> vector<8x128xf32>
    %c0_23 = arith.constant 0 : index
    %c0_24 = arith.constant 0 : index
    %26 = vector.load %arg10[%c0_23, %c0_24] : memref<1x128xf32, #tpu.memory_space<vmem>>, vector<1x128xf32>
    %27 = vector.broadcast %26 : vector<1x128xf32> to vector<8x128xf32>
    %28 = arith.addf %25, %27 : vector<8x128xf32>
    %c0_25 = arith.constant 0 : index
    %c0_26 = arith.constant 0 : index
    %29 = vector.load %arg11[%c0_25, %c0_26] : memref<8x128xf32, #tpu.memory_space<vmem>>, vector<8x128xf32>
    tpu.vector_store %arg11[%c0_25, %c0_26], %28 {strides = array<i32>} : memref<8x128xf32, #tpu.memory_space<vmem>>, vector<8x128xf32>,
    return
  }
  func.func @transform_0(%arg0: i32) -> (i32, i32) {
    %c0_i32 = arith.constant 0 : i32
    %c0_i32_0 = arith.constant 0 : i32
    return %arg0, %c0_i32 : i32, i32
  }
  func.func @transform_1(%arg0: i32) -> (i32, i32) {
    %c0_i32 = arith.constant 0 : i32
    %c0_i32_0 = arith.constant 0 : i32
    %c0_i32_1 = arith.constant 0 : i32
    return %c0_i32, %c0_i32_0 : i32, i32
  }
  func.func @transform_2(%arg0: i32) -> (i32, i32) {
    %c0_i32 = arith.constant 0 : i32
    %c0_i32_0 = arith.constant 0 : i32
    %c0_i32_1 = arith.constant 0 : i32
    return %c0_i32, %c0_i32_0 : i32, i32
  }
  func.func @transform_3(%arg0: i32) -> (i32, i32) {
    %c0_i32 = arith.constant 0 : i32
    %c0_i32_0 = arith.constant 0 : i32
    %c0_i32_1 = arith.constant 0 : i32
    return %c0_i32, %c0_i32_0 : i32, i32
  }
  func.func @transform_4(%arg0: i32) -> (i32, i32) {
    %c0_i32 = arith.constant 0 : i32
    %c0_i32_0 = arith.constant 0 : i32
    %c0_i32_1 = arith.constant 0 : i32
    return %c0_i32, %c0_i32_0 : i32, i32
  }
  func.func @transform_5(%arg0: i32) -> (i32, i32) {
    %c0_i32 = arith.constant 0 : i32
    %c0_i32_0 = arith.constant 0 : i32
    %c0_i32_1 = arith.constant 0 : i32
    return %c0_i32, %c0_i32_0 : i32, i32
  }
  func.func @transform_6(%arg0: i32) -> (i32, i32) {
    %c0_i32 = arith.constant 0 : i32
    %c0_i32_0 = arith.constant 0 : i32
    %c0_i32_1 = arith.constant 0 : i32
    return %c0_i32, %c0_i32_0 : i32, i32
  }
  func.func @transform_7(%arg0: i32) -> (i32, i32) {
    %c0_i32 = arith.constant 0 : i32
    %c0_i32_0 = arith.constant 0 : i32
    return %arg0, %c0_i32 : i32, i32
  }
  func.func @transform_8(%arg0: i32) -> (i32, i32) {
    %c0_i32 = arith.constant 0 : i32
    %c0_i32_0 = arith.constant 0 : i32
    %c0_i32_1 = arith.constant 0 : i32
    return %c0_i32, %c0_i32_0 : i32, i32
  }
  func.func @transform_9(%arg0: i32) -> (i32, i32) {
    %c0_i32 = arith.constant 0 : i32
    %c0_i32_0 = arith.constant 0 : i32
    %c0_i32_1 = arith.constant 0 : i32
    return %c0_i32, %c0_i32_0 : i32, i32
  }
  func.func @transform_10(%arg0: i32) -> (i32, i32) {
    %c0_i32 = arith.constant 0 : i32
    %c0_i32_0 = arith.constant 0 : i32
    return %arg0, %c0_i32 : i32, i32
  }
}

</mosaic_0001>

<llo_original>
// kernel: tpu_custom_call.1
$region0: #{tpu_custom_call.1}
  #allocation0 [shape = 'u32[]', space=smem, size = 0x4, offset = 0x4, fixed_abs, tag = 'smem constant byte address 0x4 - core index']
  #allocation1 [shape = 'u32[144,128]{1,0:T(1,128)}', space=vmem, size = 0x12000, scoped, tag = 'internal scratch']
  %s0 = inlined_call_operand.hbm [shape: f32[8,64], index: 0, kind: input, shape index: {}]
  %s1 = inlined_call_operand.hbm [shape: f32[64,256], index: 1, kind: input, shape index: {}]
  %s2 = inlined_call_operand.hbm [shape: f32[1,256], index: 2, kind: input, shape index: {}]
  %s3 = inlined_call_operand.hbm [shape: f32[256,512], index: 3, kind: input, shape index: {}]
  %s4 = inlined_call_operand.vmem [shape: f32[1,512], index: 4, kind: input, shape index: {}]
  %s5 = inlined_call_operand.hbm [shape: f32[512,128], index: 5, kind: input, shape index: {}]
  %s6 = inlined_call_operand.hbm [shape: f32[1,128], index: 6, kind: input, shape index: {}]
  %s7 = inlined_call_operand.vmem [shape: f32[8,128], index: 7, kind: input, shape index: {}]
  %s8 = inlined_call_operand.hbm [shape: f32[128,128], index: 8, kind: input, shape index: {}]
  %s9 = inlined_call_operand.vmem [shape: f32[1,128], index: 9, kind: input, shape index: {}]
  %s10 = inlined_call_operand.hbm [shape: f32[8,128], index: 10, kind: output, shape index: {}]
  %s11 = sld [smem:[#allocation0]]
  $region78: #{tpu_custom_call.1} parent=0
    _
  %s13 = ssub.s32 1, %s11
  %s14 = scalar_select 0, %s13, %s11
  $region1: #{tpu_custom_call.1} parent=0
    #allocation2 [shape = 'u8[4096]{0}', space=vmem, size = 0x1000, scoped, tag = 'input window, operand 0, single buffered']
    #allocation3 [shape = 's32[1]{0}', space=sflag, size = 0x4, scoped, tag = 'scoped memory for tpu_custom_call.1']
    #allocation4 [shape = 's32[1]{0}', space=sflag, size = 0x4, scoped, tag = 'scoped memory for tpu_custom_call.1']
    #allocation5 [shape = 'u8[65536]{0}', space=vmem, size = 0x10000, scoped, tag = 'input window, operand 1, single buffered']
    #allocation6 [shape = 's32[1]{0}', space=sflag, size = 0x4, scoped, tag = 'scoped memory for tpu_custom_call.1']
    #allocation7 [shape = 'u8[1024]{0}', space=vmem, size = 0x400, scoped, tag = 'input window, operand 2, single buffered']
    #allocation8 [shape = 'u8[524288]{0}', space=vmem, size = 0x80000, scoped, tag = 'input window, operand 3, single buffered']
    #allocation9 [shape = 's32[1]{0}', space=sflag, size = 0x4, scoped, tag = 'scoped memory for tpu_custom_call.1']
    #allocation10 [shape = 'u8[262144]{0}', space=vmem, size = 0x40000, scoped, tag = 'input window, operand 5, single buffered']
    #allocation11 [shape = 'u8[512]{0}', space=vmem, size = 0x400, scoped, tag = 'input window, operand 6, single buffered']
    #allocation12 [shape = 's32[1]{0}', space=sflag, size = 0x4, scoped, tag = 'scoped memory for tpu_custom_call.1']
    #allocation13 [shape = 'u8[65536]{0}', space=vmem, size = 0x10000, scoped, tag = 'input window, operand 8, single buffered']
    #allocation14 [shape = 'u8[4096]{0}', space=vmem, size = 0x1000, scoped, tag = 'output window, operand 0, single buffered']
    %15 = vsyncpa [#allocation3], 0
    %16 = vsyncpa [#allocation6], 0
    %17 = vsyncpa [#allocation9], 0
    %18 = vsyncpa [#allocation12], 0
    %19 = vsyncpa [#allocation4], 0
    // Predicated region
    $region2: #{tpu_custom_call.1} parent=1 // pred_check
      _
    $region3: #{tpu_custom_call.1} parent=1 // pred_check_branch
      %21 = sbr.rel (0) target = $region5
    $region4: #{tpu_custom_call.1} parent=1 // pred_region
      %s23 = ssub.s32 128, 128
      %24 = vsyncadd [#allocation3], %s23
      %s26 = sshll.u32 [#allocation2], 4
      %s27 = int_to_ptr.vmem [resolvable:$true] %s26
      %29 = dma.hbm_to_vmem [thread:$0]  %s0, 128, %s27, [#allocation3]
    $region5: #{tpu_custom_call.1} parent=1 // pred_fallthru
      _
    // Predicated region
    $region6: #{tpu_custom_call.1} parent=1 // pred_check
      _
    $region7: #{tpu_custom_call.1} parent=1 // pred_check_branch
      %31 = sbr.rel (0) target = $region9
    $region8: #{tpu_custom_call.1} parent=1 // pred_region
      %s33 = ssub.s32 2048, 2048
      %34 = vsyncadd [#allocation6], %s33
      %s35 = sshll.u32 [#allocation5], 4
      %s36 = int_to_ptr.vmem [resolvable:$true] %s35
      %41 = dma.hbm_to_vmem [thread:$0]  %s1, 2048, %s36, [#allocation6], 256, 256, 16
    $region9: #{tpu_custom_call.1} parent=1 // pred_fallthru
      _
    // Predicated region
    $region10: #{tpu_custom_call.1} parent=1 // pred_check
      _
    $region11: #{tpu_custom_call.1} parent=1 // pred_check_branch
      %43 = sbr.rel (0) target = $region13
    $region12: #{tpu_custom_call.1} parent=1 // pred_region
      %s45 = ssub.s32 32, 32
      %46 = vsyncadd [#allocation6], %s45
      %s48 = sshll.u32 [#allocation7], 4
      %s49 = int_to_ptr.vmem [resolvable:$true] %s48
      %51 = dma.hbm_to_vmem [thread:$0]  %s2, 32, %s49, [#allocation6]
    $region13: #{tpu_custom_call.1} parent=1 // pred_fallthru
      _
    // Predicated region
    $region14: #{tpu_custom_call.1} parent=1 // pred_check
      _
    $region15: #{tpu_custom_call.1} parent=1 // pred_check_branch
      %53 = sbr.rel (0) target = $region17
    $region16: #{tpu_custom_call.1} parent=1 // pred_region
      %s55 = ssub.s32 16384, 16384
      %56 = vsyncadd [#allocation9], %s55
      %s57 = sshll.u32 [#allocation8], 4
      %s58 = int_to_ptr.vmem [resolvable:$true] %s57
      %63 = dma.hbm_to_vmem [thread:$0]  %s3, 16384, %s58, [#allocation9], 512, 512, 32
    $region17: #{tpu_custom_call.1} parent=1 // pred_fallthru
      _
    // Predicated region
    $region18: #{tpu_custom_call.1} parent=1 // pred_check
      _
    $region19: #{tpu_custom_call.1} parent=1 // pred_check_branch
      %65 = sbr.rel (0) target = $region21
    $region20: #{tpu_custom_call.1} parent=1 // pred_region
      _
    $region21: #{tpu_custom_call.1} parent=1 // pred_fallthru
      _
    // Predicated region
    $region22: #{tpu_custom_call.1} parent=1 // pred_check
      _
    $region23: #{tpu_custom_call.1} parent=1 // pred_check_branch
      %67 = sbr.rel (0) target = $region25
    $region24: #{tpu_custom_call.1} parent=1 // pred_region
      %s69 = ssub.s32 8192, 8192
      %70 = vsyncadd [#allocation9], %s69
      %s71 = sshll.u32 [#allocation10], 4
      %s72 = int_to_ptr.vmem [resolvable:$true] %s71
      %77 = dma.hbm_to_vmem [thread:$0]  %s5, 8192, %s72, [#allocation9], 128, 128, 8
    $region25: #{tpu_custom_call.1} parent=1 // pred_fallthru
      _
    // Predicated region
    $region26: #{tpu_custom_call.1} parent=1 // pred_check
      _
    $region27: #{tpu_custom_call.1} parent=1 // pred_check_branch
      %79 = sbr.rel (0) target = $region29
    $region28: #{tpu_custom_call.1} parent=1 // pred_region
      %s81 = ssub.s32 16, 16
      %82 = vsyncadd [#allocation12], %s81
      %s84 = sshll.u32 [#allocation11], 4
      %s85 = int_to_ptr.vmem [resolvable:$true] %s84
      %87 = dma.hbm_to_vmem [thread:$0]  %s6, 16, %s85, [#allocation12]
    $region29: #{tpu_custom_call.1} parent=1 // pred_fallthru
      _
    // Predicated region
    $region30: #{tpu_custom_call.1} parent=1 // pred_check
      _
    $region31: #{tpu_custom_call.1} parent=1 // pred_check_branch
      %89 = sbr.rel (0) target = $region33
    $region32: #{tpu_custom_call.1} parent=1 // pred_region
      _
    $region33: #{tpu_custom_call.1} parent=1 // pred_fallthru
      _
    // Predicated region
    $region34: #{tpu_custom_call.1} parent=1 // pred_check
      _
    $region35: #{tpu_custom_call.1} parent=1 // pred_check_branch
      %91 = sbr.rel (0) target = $region37
    $region36: #{tpu_custom_call.1} parent=1 // pred_region
      %s93 = ssub.s32 2048, 2048
      %94 = vsyncadd [#allocation12], %s93
      %s95 = sshll.u32 [#allocation13], 4
      %s96 = int_to_ptr.vmem [resolvable:$true] %s95
      %101 = dma.hbm_to_vmem [thread:$0]  %s8, 2048, %s96, [#allocation12], 128, 128, 8
    $region37: #{tpu_custom_call.1} parent=1 // pred_fallthru
      _
    // Predicated region
    $region38: #{tpu_custom_call.1} parent=1 // pred_check
      _
    $region39: #{tpu_custom_call.1} parent=1 // pred_check_branch
      %103 = sbr.rel (0) target = $region41
    $region40: #{tpu_custom_call.1} parent=1 // pred_region
      _
    $region41: #{tpu_custom_call.1} parent=1 // pred_fallthru
      _
    // Predicated region
    $region42: #{tpu_custom_call.1} parent=1 // pred_check
      _
    $region43: #{tpu_custom_call.1} parent=1 // pred_check_branch
      %105 = sbr.rel (0) target = $region45
    $region44: #{tpu_custom_call.1} parent=1 // pred_region
      %106 = dma.done [#allocation3], 128
    $region45: #{tpu_custom_call.1} parent=1 // pred_fallthru
      _
    // Predicated region
    $region46: #{tpu_custom_call.1} parent=1 // pred_check
      _
    $region47: #{tpu_custom_call.1} parent=1 // pred_check_branch
      %108 = sbr.rel (0) target = $region49
    $region48: #{tpu_custom_call.1} parent=1 // pred_region
      %109 = dma.done [#allocation6], 2048
    $region49: #{tpu_custom_call.1} parent=1 // pred_fallthru
      _
    // Predicated region
    $region50: #{tpu_custom_call.1} parent=1 // pred_check
      _
    $region51: #{tpu_custom_call.1} parent=1 // pred_check_branch
      %111 = sbr.rel (0) target = $region53
    $region52: #{tpu_custom_call.1} parent=1 // pred_region
      %112 = dma.done [#allocation6], 32
    $region53: #{tpu_custom_call.1} parent=1 // pred_fallthru
      _
    // Predicated region
    $region54: #{tpu_custom_call.1} parent=1 // pred_check
      _
    $region55: #{tpu_custom_call.1} parent=1 // pred_check_branch
      %114 = sbr.rel (0) target = $region57
    $region56: #{tpu_custom_call.1} parent=1 // pred_region
      %115 = dma.done [#allocation9], 16384
    $region57: #{tpu_custom_call.1} parent=1 // pred_fallthru
      _
    // Predicated region
    $region58: #{tpu_custom_call.1} parent=1 // pred_check
      _
    $region59: #{tpu_custom_call.1} parent=1 // pred_check_branch
      %117 = sbr.rel (0) target = $region61
    $region60: #{tpu_custom_call.1} parent=1 // pred_region
      %118 = dma.done [#allocation9], 8192
    $region61: #{tpu_custom_call.1} parent=1 // pred_fallthru
      _
    // Predicated region
    $region62: #{tpu_custom_call.1} parent=1 // pred_check
      _
    $region63: #{tpu_custom_call.1} parent=1 // pred_check_branch
      %120 = sbr.rel (0) target = $region65
    $region64: #{tpu_custom_call.1} parent=1 // pred_region
      %121 = dma.done [#allocation12], 16
    $region65: #{tpu_custom_call.1} parent=1 // pred_fallthru
      _
    // Predicated region
    $region66: #{tpu_custom_call.1} parent=1 // pred_check
      _
    $region67: #{tpu_custom_call.1} parent=1 // pred_check_branch
      %123 = sbr.rel (0) target = $region69
    $region68: #{tpu_custom_call.1} parent=1 // pred_region
      %124 = dma.done [#allocation12], 2048
    $region69: #{tpu_custom_call.1} parent=1 // pred_fallthru
      _
    %v125 = vld [vmem:[#allocation2] sm:$0xff]
    %v126 = vld [vmem:[#allocation5] sm:$0xff]
    %v127 = vld [vmem:[#allocation5 + $0x8] sm:$0xff]
    %v128 = vld [vmem:[#allocation5 + $0x10] sm:$0xff]
    %v129 = vld [vmem:[#allocation5 + $0x18] sm:$0xff]
    %v130 = vld [vmem:[#allocation5 + $0x20] sm:$0xff]
    %v131 = vld [vmem:[#allocation5 + $0x28] sm:$0xff]
    %v132 = vld [vmem:[#allocation5 + $0x30] sm:$0xff]
    %v133 = vld [vmem:[#allocation5 + $0x38] sm:$0xff]
    %v134 = vld [vmem:[#allocation5 + $0x40] sm:$0xff]
    %v135 = vld [vmem:[#allocation5 + $0x48] sm:$0xff]
    %v136 = vld [vmem:[#allocation5 + $0x50] sm:$0xff]
    %v137 = vld [vmem:[#allocation5 + $0x58] sm:$0xff]
    %v138 = vld [vmem:[#allocation5 + $0x60] sm:$0xff]
    %v139 = vld [vmem:[#allocation5 + $0x68] sm:$0xff]
    %v140 = vld [vmem:[#allocation5 + $0x70] sm:$0xff]
    %v141 = vld [vmem:[#allocation5 + $0x78] sm:$0xff]
    %v142 = vld [vmem:[#allocation7] sm:$0x3]
    %v144 = vlaneseq
    %v145 = vshrl.u32 %v144, 7
    %v146 = vsub.s32 0, %v145
    %v147 = vrot.slane %v142, %v146
    %v148 = vlaneseq
    %v149 = vshrl.u32 %v148, 7
    %v150 = vsub.s32 1, %v149
    %v151 = vrot.slane %v142, %v150
    %vm154 = vcmask 523264
    %v156 = vsel %vm154, %v125, 0
    %158 = vmatprep.subr.mxu0 0.0
    %159 = vmatpush1.msra.mxu0 0.0
    %160 = vmatprep.subr.mxu0 0.0
    %161 = vmatpush1.msra.mxu0 0.0
    %162 = vmatprep.subr.mxu0 0.0
    %163 = vmatpush1.msra.mxu0 0.0
    %164 = vmatprep.subr.mxu0 0.0
    %165 = vmatpush1.msra.mxu0 0.0
    %166 = vmatprep.subr.mxu0 0.0
    %167 = vmatpush1.msra.mxu0 0.0
    %168 = vmatprep.subr.mxu0 0.0
    %169 = vmatpush1.msra.mxu0 0.0
    %170 = vmatprep.subr.mxu0 0.0
    %171 = vmatpush1.msra.mxu0 0.0
    %172 = vmatprep.subr.mxu0 0.0
    %173 = vmatpush1.msra.mxu0 0.0
    %174 = vmatprep.subr.mxu0 %v141
    %175 = vmatpush1.msra.mxu0 %v140
    %176 = vmatprep.subr.mxu0 %v139
    %177 = vmatpush1.msra.mxu0 %v138
    %178 = vmatprep.subr.mxu0 %v137
    %179 = vmatpush1.msra.mxu0 %v136
    %180 = vmatprep.subr.mxu0 %v135
    %181 = vmatpush1.msra.mxu0 %v134
    %182 = vmatprep.subr.mxu0 %v133
    %183 = vmatpush1.msra.mxu0 %v132
    %184 = vmatprep.subr.mxu0 %v131
    %185 = vmatpush1.msra.mxu0 %v130
    %186 = vmatprep.subr.mxu0 %v129
    %187 = vmatpush1.msra.mxu0 %v128
    %188 = vmatprep.subr.mxu0 %v127
    %189 = vmatpush1.msra.mxu0 %v126
    %190 = vmatprep.subr.mxu0 0.0
    %191 = vmatpush2.msra.mxu0 0.0
    %192 = vmatprep.subr.mxu0 0.0
    %193 = vmatpush2.msra.mxu0 0.0
    %194 = vmatprep.subr.mxu0 0.0
    %195 = vmatpush2.msra.mxu0 0.0
    %196 = vmatprep.subr.mxu0 0.0
    %197 = vmatpush2.msra.mxu0 0.0
    %198 = vmatprep.subr.mxu0 0.0
    %199 = vmatpush2.msra.mxu0 0.0
    %200 = vmatprep.subr.mxu0 0.0
    %201 = vmatpush2.msra.mxu0 0.0
    %202 = vmatprep.subr.mxu0 0.0
    %203 = vmatpush2.msra.mxu0 0.0
    %204 = vmatprep.subr.mxu0 0.0
    %205 = vmatpush2.msra.mxu0 0.0
    %206 = vmatprep.subr.mxu0 0.0
    %207 = vmatpush2.msra.mxu0 0.0
    %208 = vmatprep.subr.mxu0 0.0
    %209 = vmatpush2.msra.mxu0 0.0
    %210 = vmatprep.subr.mxu0 0.0
    %211 = vmatpush2.msra.mxu0 0.0
    %212 = vmatprep.subr.mxu0 0.0
    %213 = vmatpush2.msra.mxu0 0.0
    %214 = vmatprep.subr.mxu0 0.0
    %215 = vmatpush2.msra.mxu0 0.0
    %216 = vmatprep.subr.mxu0 0.0
    %217 = vmatpush2.msra.mxu0 0.0
    %218 = vmatprep.subr.mxu0 0.0
    %219 = vmatpush2.msra.mxu0 0.0
    %220 = vmatprep.subr.mxu0 0.0
    %221 = vmatpush2.msra.mxu0 0.0
    %222 = vmatprep.mubr.f32.mxu0 0.0
    %223 = vmatmul.mubr.f32.gmra.mxu0 %v156
    %v224 = vpop.f32.mrf.mxu0
    %v225 = vadd.f32 %v147, %v224
    %v226 = vpop.f32.mrf.mxu0
    %v227 = vadd.f32 %v151, %v226
    %228 = vdwg.mxu0
    %v229 = vmax.f32 %v225, 0.0
    %v230 = vmax.f32 %v227, 0.0
    %v231 = vld [vmem:[#allocation8] sm:$0xff]
    %v232 = vld [vmem:[#allocation8 + $0x8] sm:$0xff]
    %v233 = vld [vmem:[#allocation8 + $0x10] sm:$0xff]
    %v234 = vld [vmem:[#allocation8 + $0x18] sm:$0xff]
    %v235 = vld [vmem:[#allocation8 + $0x20] sm:$0xff]
    %v236 = vld [vmem:[#allocation8 + $0x28] sm:$0xff]
    %v237 = vld [vmem:[#allocation8 + $0x30] sm:$0xff]
    %v238 = vld [vmem:[#allocation8 + $0x38] sm:$0xff]
    %v239 = vld [vmem:[#allocation8 + $0x40] sm:$0xff]
    %v240 = vld [vmem:[#allocation8 + $0x48] sm:$0xff]
    %v241 = vld [vmem:[#allocation8 + $0x50] sm:$0xff]
    %v242 = vld [vmem:[#allocation8 + $0x58] sm:$0xff]
    %v243 = vld [vmem:[#allocation8 + $0x60] sm:$0xff]
    %v244 = vld [vmem:[#allocation8 + $0x68] sm:$0xff]
    %v245 = vld [vmem:[#allocation8 + $0x70] sm:$0xff]
    %v246 = vld [vmem:[#allocation8 + $0x78] sm:$0xff]
    %v247 = vld [vmem:[#allocation8 + $0x80] sm:$0xff]
    %v248 = vld [vmem:[#allocation8 + $0x88] sm:$0xff]
    %v249 = vld [vmem:[#allocation8 + $0x90] sm:$0xff]
    %v250 = vld [vmem:[#allocation8 + $0x98] sm:$0xff]
    %v251 = vld [vmem:[#allocation8 + $0xa0] sm:$0xff]
    %v252 = vld [vmem:[#allocation8 + $0xa8] sm:$0xff]
    %v253 = vld [vmem:[#allocation8 + $0xb0] sm:$0xff]
    %v254 = vld [vmem:[#allocation8 + $0xb8] sm:$0xff]
    %v255 = vld [vmem:[#allocation8 + $0xc0] sm:$0xff]
    %v256 = vld [vmem:[#allocation8 + $0xc8] sm:$0xff]
    %v257 = vld [vmem:[#allocation8 + $0xd0] sm:$0xff]
    %v258 = vld [vmem:[#allocation8 + $0xd8] sm:$0xff]
    %v259 = vld [vmem:[#allocation8 + $0xe0] sm:$0xff]
    %v260 = vld [vmem:[#allocation8 + $0xe8] sm:$0xff]
    %v261 = vld [vmem:[#allocation8 + $0xf0] sm:$0xff]
    %v262 = vld [vmem:[#allocation8 + $0xf8] sm:$0xff]
    %v263 = vld [vmem:[#allocation8 + $0x100] sm:$0xff]
    %v264 = vld [vmem:[#allocation8 + $0x108] sm:$0xff]
    %v265 = vld [vmem:[#allocation8 + $0x110] sm:$0xff]
    %v266 = vld [vmem:[#allocation8 + $0x118] sm:$0xff]
    %v267 = vld [vmem:[#allocation8 + $0x120] sm:$0xff]
    %v268 = vld [vmem:[#allocation8 + $0x128] sm:$0xff]
    %v269 = vld [vmem:[#allocation8 + $0x130] sm:$0xff]
    %v270 = vld [vmem:[#allocation8 + $0x138] sm:$0xff]
    %v271 = vld [vmem:[#allocation8 + $0x140] sm:$0xff]
    %v272 = vld [vmem:[#allocation8 + $0x148] sm:$0xff]
    %v273 = vld [vmem:[#allocation8 + $0x150] sm:$0xff]
    %v274 = vld [vmem:[#allocation8 + $0x158] sm:$0xff]
    %v275 = vld [vmem:[#allocation8 + $0x160] sm:$0xff]
    %v276 = vld [vmem:[#allocation8 + $0x168] sm:$0xff]
    %v277 = vld [vmem:[#allocation8 + $0x170] sm:$0xff]
    %v278 = vld [vmem:[#allocation8 + $0x178] sm:$0xff]
    %v279 = vld [vmem:[#allocation8 + $0x180] sm:$0xff]
    %v280 = vld [vmem:[#allocation8 + $0x188] sm:$0xff]
    %v281 = vld [vmem:[#allocation8 + $0x190] sm:$0xff]
    %v282 = vld [vmem:[#allocation8 + $0x198] sm:$0xff]
    %v283 = vld [vmem:[#allocation8 + $0x1a0] sm:$0xff]
    %v284 = vld [vmem:[#allocation8 + $0x1a8] sm:$0xff]
    %v285 = vld [vmem:[#allocation8 + $0x1b0] sm:$0xff]
    %v286 = vld [vmem:[#allocation8 + $0x1b8] sm:$0xff]
    %v287 = vld [vmem:[#allocation8 + $0x1c0] sm:$0xff]
    %v288 = vld [vmem:[#allocation8 + $0x1c8] sm:$0xff]
    %v289 = vld [vmem:[#allocation8 + $0x1d0] sm:$0xff]
    %v290 = vld [vmem:[#allocation8 + $0x1d8] sm:$0xff]
    %v291 = vld [vmem:[#allocation8 + $0x1e0] sm:$0xff]
    %v292 = vld [vmem:[#allocation8 + $0x1e8] sm:$0xff]
    %v293 = vld [vmem:[#allocation8 + $0x1f0] sm:$0xff]
    %v294 = vld [vmem:[#allocation8 + $0x1f8] sm:$0xff]
    %v295 = vld [vmem:[#allocation8 + $0x200] sm:$0xff]
    %v296 = vld [vmem:[#allocation8 + $0x208] sm:$0xff]
    %v297 = vld [vmem:[#allocation8 + $0x210] sm:$0xff]
    %v298 = vld [vmem:[#allocation8 + $0x218] sm:$0xff]
    %v299 = vld [vmem:[#allocation8 + $0x220] sm:$0xff]
    %v300 = vld [vmem:[#allocation8 + $0x228] sm:$0xff]
    %v301 = vld [vmem:[#allocation8 + $0x230] sm:$0xff]
    %v302 = vld [vmem:[#allocation8 + $0x238] sm:$0xff]
    %v303 = vld [vmem:[#allocation8 + $0x240] sm:$0xff]
    %v304 = vld [vmem:[#allocation8 + $0x248] sm:$0xff]
    %v305 = vld [vmem:[#allocation8 + $0x250] sm:$0xff]
    %v306 = vld [vmem:[#allocation8 + $0x258] sm:$0xff]
    %v307 = vld [vmem:[#allocation8 + $0x260] sm:$0xff]
    %v308 = vld [vmem:[#allocation8 + $0x268] sm:$0xff]
    %v309 = vld [vmem:[#allocation8 + $0x270] sm:$0xff]
    %v310 = vld [vmem:[#allocation8 + $0x278] sm:$0xff]
    %v311 = vld [vmem:[#allocation8 + $0x280] sm:$0xff]
    %v312 = vld [vmem:[#allocation8 + $0x288] sm:$0xff]
    %v313 = vld [vmem:[#allocation8 + $0x290] sm:$0xff]
    %v314 = vld [vmem:[#allocation8 + $0x298] sm:$0xff]
    %v315 = vld [vmem:[#allocation8 + $0x2a0] sm:$0xff]
    %v316 = vld [vmem:[#allocation8 + $0x2a8] sm:$0xff]
    %v317 = vld [vmem:[#allocation8 + $0x2b0] sm:$0xff]
    %v318 = vld [vmem:[#allocation8 + $0x2b8] sm:$0xff]
    %v319 = vld [vmem:[#allocation8 + $0x2c0] sm:$0xff]
    %v320 = vld [vmem:[#allocation8 + $0x2c8] sm:$0xff]
    %v321 = vld [vmem:[#allocation8 + $0x2d0] sm:$0xff]
    %v322 = vld [vmem:[#allocation8 + $0x2d8] sm:$0xff]
    %v323 = vld [vmem:[#allocation8 + $0x2e0] sm:$0xff]
    %v324 = vld [vmem:[#allocation8 + $0x2e8] sm:$0xff]
    %v325 = vld [vmem:[#allocation8 + $0x2f0] sm:$0xff]
    %v326 = vld [vmem:[#allocation8 + $0x2f8] sm:$0xff]
    %v327 = vld [vmem:[#allocation8 + $0x300] sm:$0xff]
    %v328 = vld [vmem:[#allocation8 + $0x308] sm:$0xff]
    %v329 = vld [vmem:[#allocation8 + $0x310] sm:$0xff]
    %v330 = vld [vmem:[#allocation8 + $0x318] sm:$0xff]
    %v331 = vld [vmem:[#allocation8 + $0x320] sm:$0xff]
    %v332 = vld [vmem:[#allocation8 + $0x328] sm:$0xff]
    %v333 = vld [vmem:[#allocation8 + $0x330] sm:$0xff]
    %v334 = vld [vmem:[#allocation8 + $0x338] sm:$0xff]
    %v335 = vld [vmem:[#allocation8 + $0x340] sm:$0xff]
    %v336 = vld [vmem:[#allocation8 + $0x348] sm:$0xff]
    %v337 = vld [vmem:[#allocation8 + $0x350] sm:$0xff]
    %v338 = vld [vmem:[#allocation8 + $0x358] sm:$0xff]
    %v339 = vld [vmem:[#allocation8 + $0x360] sm:$0xff]
    %v340 = vld [vmem:[#allocation8 + $0x368] sm:$0xff]
    %v341 = vld [vmem:[#allocation8 + $0x370] sm:$0xff]
    %v342 = vld [vmem:[#allocation8 + $0x378] sm:$0xff]
    %v343 = vld [vmem:[#allocation8 + $0x380] sm:$0xff]
    %v344 = vld [vmem:[#allocation8 + $0x388] sm:$0xff]
    %v345 = vld [vmem:[#allocation8 + $0x390] sm:$0xff]
    %v346 = vld [vmem:[#allocation8 + $0x398] sm:$0xff]
    %v347 = vld [vmem:[#allocation8 + $0x3a0] sm:$0xff]
    %v348 = vld [vmem:[#allocation8 + $0x3a8] sm:$0xff]
    %v349 = vld [vmem:[#allocation8 + $0x3b0] sm:$0xff]
    %v350 = vld [vmem:[#allocation8 + $0x3b8] sm:$0xff]
    %v351 = vld [vmem:[#allocation8 + $0x3c0] sm:$0xff]
    %v352 = vld [vmem:[#allocation8 + $0x3c8] sm:$0xff]
    %v353 = vld [vmem:[#allocation8 + $0x3d0] sm:$0xff]
    %v354 = vld [vmem:[#allocation8 + $0x3d8] sm:$0xff]
    %v355 = vld [vmem:[#allocation8 + $0x3e0] sm:$0xff]
    %v356 = vld [vmem:[#allocation8 + $0x3e8] sm:$0xff]
    %v357 = vld [vmem:[#allocation8 + $0x3f0] sm:$0xff]
    %v358 = vld [vmem:[#allocation8 + $0x3f8] sm:$0xff]
    %v359 = vld [vmem:[%s4] sm:$0xf]
    %v361 = vlaneseq
    %v362 = vshrl.u32 %v361, 7
    %v363 = vsub.s32 0, %v362
    %v364 = vrot.slane %v359, %v363
    %v365 = vlaneseq
    %v366 = vshrl.u32 %v365, 7
    %v367 = vsub.s32 1, %v366
    %v368 = vrot.slane %v359, %v367
    %v369 = vlaneseq
    %v370 = vshrl.u32 %v369, 7
    %v371 = vsub.s32 2, %v370
    %v372 = vrot.slane %v359, %v371
    %v373 = vlaneseq
    %v374 = vshrl.u32 %v373, 7
    %v375 = vsub.s32 3, %v374
    %v376 = vrot.slane %v359, %v375
    %381 = vmatprep.subr.mxu0 %v292
    %382 = vmatpush1.msra.mxu0 %v291
    %383 = vmatprep.subr.mxu0 %v288
    %384 = vmatpush1.msra.mxu0 %v287
    %385 = vmatprep.subr.mxu0 %v284
    %386 = vmatpush1.msra.mxu0 %v283
    %387 = vmatprep.subr.mxu0 %v280
    %388 = vmatpush1.msra.mxu0 %v279
    %389 = vmatprep.subr.mxu0 %v276
    %390 = vmatpush1.msra.mxu0 %v275
    %391 = vmatprep.subr.mxu0 %v272
    %392 = vmatpush1.msra.mxu0 %v271
    %393 = vmatprep.subr.mxu0 %v268
    %394 = vmatpush1.msra.mxu0 %v267
    %395 = vmatprep.subr.mxu0 %v264
    %396 = vmatpush1.msra.mxu0 %v263
    %397 = vmatprep.subr.mxu0 %v260
    %398 = vmatpush1.msra.mxu0 %v259
    %399 = vmatprep.subr.mxu0 %v256
    %400 = vmatpush1.msra.mxu0 %v255
    %401 = vmatprep.subr.mxu0 %v252
    %402 = vmatpush1.msra.mxu0 %v251
    %403 = vmatprep.subr.mxu0 %v248
    %404 = vmatpush1.msra.mxu0 %v247
    %405 = vmatprep.subr.mxu0 %v244
    %406 = vmatpush1.msra.mxu0 %v243
    %407 = vmatprep.subr.mxu0 %v240
    %408 = vmatpush1.msra.mxu0 %v239
    %409 = vmatprep.subr.mxu0 %v236
    %410 = vmatpush1.msra.mxu0 %v235
    %411 = vmatprep.subr.mxu0 %v232
    %412 = vmatpush1.msra.mxu0 %v231
    %413 = vmatprep.subr.mxu0 %v356
    %414 = vmatpush2.msra.mxu0 %v355
    %415 = vmatprep.subr.mxu0 %v352
    %416 = vmatpush2.msra.mxu0 %v351
    %417 = vmatprep.subr.mxu0 %v348
    %418 = vmatpush2.msra.mxu0 %v347
    %419 = vmatprep.subr.mxu0 %v344
    %420 = vmatpush2.msra.mxu0 %v343
    %421 = vmatprep.subr.mxu0 %v340
    %422 = vmatpush2.msra.mxu0 %v339
    %423 = vmatprep.subr.mxu0 %v336
    %424 = vmatpush2.msra.mxu0 %v335
    %425 = vmatprep.subr.mxu0 %v332
    %426 = vmatpush2.msra.mxu0 %v331
    %427 = vmatprep.subr.mxu0 %v328
    %428 = vmatpush2.msra.mxu0 %v327
    %429 = vmatprep.subr.mxu0 %v324
    %430 = vmatpush2.msra.mxu0 %v323
    %431 = vmatprep.subr.mxu0 %v320
    %432 = vmatpush2.msra.mxu0 %v319
    %433 = vmatprep.subr.mxu0 %v316
    %434 = vmatpush2.msra.mxu0 %v315
    %435 = vmatprep.subr.mxu0 %v312
    %436 = vmatpush2.msra.mxu0 %v311
    %437 = vmatprep.subr.mxu0 %v308
    %438 = vmatpush2.msra.mxu0 %v307
    %439 = vmatprep.subr.mxu0 %v304
    %440 = vmatpush2.msra.mxu0 %v303
    %441 = vmatprep.subr.mxu0 %v300
    %442 = vmatpush2.msra.mxu0 %v299
    %443 = vmatprep.subr.mxu0 %v296
    %444 = vmatpush2.msra.mxu0 %v295
    %445 = vmatprep.mubr.f32.mxu0 %v230
    %446 = vmatmul.mubr.f32.gmra.mxu0 %v229
    %v447 = vpop.f32.mrf.mxu0
    %v448 = vadd.f32 %v364, %v447
    %v449 = vpop.f32.mrf.mxu0
    %v450 = vadd.f32 %v368, %v449
    %451 = vdwg.mxu0
    %452 = vmatprep.subr.mxu0 %v294
    %453 = vmatpush1.msra.mxu0 %v293
    %454 = vmatprep.subr.mxu0 %v290
    %455 = vmatpush1.msra.mxu0 %v289
    %456 = vmatprep.subr.mxu0 %v286
    %457 = vmatpush1.msra.mxu0 %v285
    %458 = vmatprep.subr.mxu0 %v282
    %459 = vmatpush1.msra.mxu0 %v281
    %460 = vmatprep.subr.mxu0 %v278
    %461 = vmatpush1.msra.mxu0 %v277
    %462 = vmatprep.subr.mxu0 %v274
    %463 = vmatpush1.msra.mxu0 %v273
    %464 = vmatprep.subr.mxu0 %v270
    %465 = vmatpush1.msra.mxu0 %v269
    %466 = vmatprep.subr.mxu0 %v266
    %467 = vmatpush1.msra.mxu0 %v265
    %468 = vmatprep.subr.mxu0 %v262
    %469 = vmatpush1.msra.mxu0 %v261
    %470 = vmatprep.subr.mxu0 %v258
    %471 = vmatpush1.msra.mxu0 %v257
    %472 = vmatprep.subr.mxu0 %v254
    %473 = vmatpush1.msra.mxu0 %v253
    %474 = vmatprep.subr.mxu0 %v250
    %475 = vmatpush1.msra.mxu0 %v249
    %476 = vmatprep.subr.mxu0 %v246
    %477 = vmatpush1.msra.mxu0 %v245
    %478 = vmatprep.subr.mxu0 %v242
    %479 = vmatpush1.msra.mxu0 %v241
    %480 = vmatprep.subr.mxu0 %v238
    %481 = vmatpush1.msra.mxu0 %v237
    %482 = vmatprep.subr.mxu0 %v234
    %483 = vmatpush1.msra.mxu0 %v233
    %484 = vmatprep.subr.mxu0 %v358
    %485 = vmatpush2.msra.mxu0 %v357
    %486 = vmatprep.subr.mxu0 %v354
    %487 = vmatpush2.msra.mxu0 %v353
    %488 = vmatprep.subr.mxu0 %v350
    %489 = vmatpush2.msra.mxu0 %v349
    %490 = vmatprep.subr.mxu0 %v346
    %491 = vmatpush2.msra.mxu0 %v345
    %492 = vmatprep.subr.mxu0 %v342
    %493 = vmatpush2.msra.mxu0 %v341
    %494 = vmatprep.subr.mxu0 %v338
    %495 = vmatpush2.msra.mxu0 %v337
    %496 = vmatprep.subr.mxu0 %v334
    %497 = vmatpush2.msra.mxu0 %v333
    %498 = vmatprep.subr.mxu0 %v330
    %499 = vmatpush2.msra.mxu0 %v329
    %500 = vmatprep.subr.mxu0 %v326
    %501 = vmatpush2.msra.mxu0 %v325
    %502 = vmatprep.subr.mxu0 %v322
    %503 = vmatpush2.msra.mxu0 %v321
    %504 = vmatprep.subr.mxu0 %v318
    %505 = vmatpush2.msra.mxu0 %v317
    %506 = vmatprep.subr.mxu0 %v314
    %507 = vmatpush2.msra.mxu0 %v313
    %508 = vmatprep.subr.mxu0 %v310
    %509 = vmatpush2.msra.mxu0 %v309
    %510 = vmatprep.subr.mxu0 %v306
    %511 = vmatpush2.msra.mxu0 %v305
    %512 = vmatprep.subr.mxu0 %v302
    %513 = vmatpush2.msra.mxu0 %v301
    %514 = vmatprep.subr.mxu0 %v298
    %515 = vmatpush2.msra.mxu0 %v297
    %516 = vmatprep.mubr.f32.mxu0 %v230
    %517 = vmatmul.mubr.f32.gmra.mxu0 %v229
    %v518 = vpop.f32.mrf.mxu0
    %v519 = vadd.f32 %v372, %v518
    %v520 = vpop.f32.mrf.mxu0
    %v521 = vadd.f32 %v376, %v520
    %522 = vdwg.mxu0
    %v523 = vmax.f32 %v448, 0.0
    %v524 = vmax.f32 %v450, 0.0
    %v525 = vmax.f32 %v519, 0.0
    %v526 = vmax.f32 %v521, 0.0
    %v527 = vld [vmem:[#allocation10] sm:$0xff]
    %v528 = vld [vmem:[#allocation10 + $0x8] sm:$0xff]
    %v529 = vld [vmem:[#allocation10 + $0x10] sm:$0xff]
    %v530 = vld [vmem:[#allocation10 + $0x18] sm:$0xff]
    %v531 = vld [vmem:[#allocation10 + $0x20] sm:$0xff]
    %v532 = vld [vmem:[#allocation10 + $0x28] sm:$0xff]
    %v533 = vld [vmem:[#allocation10 + $0x30] sm:$0xff]
    %v534 = vld [vmem:[#allocation10 + $0x38] sm:$0xff]
    %v535 = vld [vmem:[#allocation10 + $0x40] sm:$0xff]
    %v536 = vld [vmem:[#allocation10 + $0x48] sm:$0xff]
    %v537 = vld [vmem:[#allocation10 + $0x50] sm:$0xff]
    %v538 = vld [vmem:[#allocation10 + $0x58] sm:$0xff]
    %v539 = vld [vmem:[#allocation10 + $0x60] sm:$0xff]
    %v540 = vld [vmem:[#allocation10 + $0x68] sm:$0xff]
    %v541 = vld [vmem:[#allocation10 + $0x70] sm:$0xff]
    %v542 = vld [vmem:[#allocation10 + $0x78] sm:$0xff]
    %v543 = vld [vmem:[#allocation10 + $0x80] sm:$0xff]
    %v544 = vld [vmem:[#allocation10 + $0x88] sm:$0xff]
    %v545 = vld [vmem:[#allocation10 + $0x90] sm:$0xff]
    %v546 = vld [vmem:[#allocation10 + $0x98] sm:$0xff]
    %v547 = vld [vmem:[#allocation10 + $0xa0] sm:$0xff]
    %v548 = vld [vmem:[#allocation10 + $0xa8] sm:$0xff]
    %v549 = vld [vmem:[#allocation10 + $0xb0] sm:$0xff]
    %v550 = vld [vmem:[#allocation10 + $0xb8] sm:$0xff]
    %v551 = vld [vmem:[#allocation10 + $0xc0] sm:$0xff]
    %v552 = vld [vmem:[#allocation10 + $0xc8] sm:$0xff]
    %v553 = vld [vmem:[#allocation10 + $0xd0] sm:$0xff]
    %v554 = vld [vmem:[#allocation10 + $0xd8] sm:$0xff]
    %v555 = vld [vmem:[#allocation10 + $0xe0] sm:$0xff]
    %v556 = vld [vmem:[#allocation10 + $0xe8] sm:$0xff]
    %v557 = vld [vmem:[#allocation10 + $0xf0] sm:$0xff]
    %v558 = vld [vmem:[#allocation10 + $0xf8] sm:$0xff]
    %v559 = vld [vmem:[#allocation10 + $0x100] sm:$0xff]
    %v560 = vld [vmem:[#allocation10 + $0x108] sm:$0xff]
    %v561 = vld [vmem:[#allocation10 + $0x110] sm:$0xff]
    %v562 = vld [vmem:[#allocation10 + $0x118] sm:$0xff]
    %v563 = vld [vmem:[#allocation10 + $0x120] sm:$0xff]
    %v564 = vld [vmem:[#allocation10 + $0x128] sm:$0xff]
    %v565 = vld [vmem:[#allocation10 + $0x130] sm:$0xff]
    %v566 = vld [vmem:[#allocation10 + $0x138] sm:$0xff]
    %v567 = vld [vmem:[#allocation10 + $0x140] sm:$0xff]
    %v568 = vld [vmem:[#allocation10 + $0x148] sm:$0xff]
    %v569 = vld [vmem:[#allocation10 + $0x150] sm:$0xff]
    %v570 = vld [vmem:[#allocation10 + $0x158] sm:$0xff]
    %v571 = vld [vmem:[#allocation10 + $0x160] sm:$0xff]
    %v572 = vld [vmem:[#allocation10 + $0x168] sm:$0xff]
    %v573 = vld [vmem:[#allocation10 + $0x170] sm:$0xff]
    %v574 = vld [vmem:[#allocation10 + $0x178] sm:$0xff]
    %v575 = vld [vmem:[#allocation10 + $0x180] sm:$0xff]
    %v576 = vld [vmem:[#allocation10 + $0x188] sm:$0xff]
    %v577 = vld [vmem:[#allocation10 + $0x190] sm:$0xff]
    %v578 = vld [vmem:[#allocation10 + $0x198] sm:$0xff]
    %v579 = vld [vmem:[#allocation10 + $0x1a0] sm:$0xff]
    %v580 = vld [vmem:[#allocation10 + $0x1a8] sm:$0xff]
    %v581 = vld [vmem:[#allocation10 + $0x1b0] sm:$0xff]
    %v582 = vld [vmem:[#allocation10 + $0x1b8] sm:$0xff]
    %v583 = vld [vmem:[#allocation10 + $0x1c0] sm:$0xff]
    %v584 = vld [vmem:[#allocation10 + $0x1c8] sm:$0xff]
    %v585 = vld [vmem:[#allocation10 + $0x1d0] sm:$0xff]
    %v586 = vld [vmem:[#allocation10 + $0x1d8] sm:$0xff]
    %v587 = vld [vmem:[#allocation10 + $0x1e0] sm:$0xff]
    %v588 = vld [vmem:[#allocation10 + $0x1e8] sm:$0xff]
    %v589 = vld [vmem:[#allocation10 + $0x1f0] sm:$0xff]
    %v590 = vld [vmem:[#allocation10 + $0x1f8] sm:$0xff]
    %v591 = vld [vmem:[#allocation11] sm:$0x1]
    %v593 = vlaneseq
    %v594 = vshrl.u32 %v593, 7
    %v595 = vsub.s32 0, %v594
    %v596 = vrot.slane %v591, %v595
    %598 = vmatprep.subr.mxu0 0.0
    %599 = vmatpush1.msra.mxu0 %v542
    %600 = vmatprep.subr.mxu0 0.0
    %601 = vmatpush1.msra.mxu0 %v541
    %602 = vmatprep.subr.mxu0 0.0
    %603 = vmatpush1.msra.mxu0 %v540
    %604 = vmatprep.subr.mxu0 0.0
    %605 = vmatpush1.msra.mxu0 %v539
    %606 = vmatprep.subr.mxu0 0.0
    %607 = vmatpush1.msra.mxu0 %v538
    %608 = vmatprep.subr.mxu0 0.0
    %609 = vmatpush1.msra.mxu0 %v537
    %610 = vmatprep.subr.mxu0 0.0
    %611 = vmatpush1.msra.mxu0 %v536
    %612 = vmatprep.subr.mxu0 0.0
    %613 = vmatpush1.msra.mxu0 %v535
    %614 = vmatprep.subr.mxu0 0.0
    %615 = vmatpush1.msra.mxu0 %v534
    %616 = vmatprep.subr.mxu0 0.0
    %617 = vmatpush1.msra.mxu0 %v533
    %618 = vmatprep.subr.mxu0 0.0
    %619 = vmatpush1.msra.mxu0 %v532
    %620 = vmatprep.subr.mxu0 0.0
    %621 = vmatpush1.msra.mxu0 %v531
    %622 = vmatprep.subr.mxu0 0.0
    %623 = vmatpush1.msra.mxu0 %v530
    %624 = vmatprep.subr.mxu0 0.0
    %625 = vmatpush1.msra.mxu0 %v529
    %626 = vmatprep.subr.mxu0 0.0
    %627 = vmatpush1.msra.mxu0 %v528
    %628 = vmatprep.subr.mxu0 0.0
    %629 = vmatpush1.msra.mxu0 %v527
    %630 = vmatprep.subr.mxu0 0.0
    %631 = vmatpush2.msra.mxu0 %v558
    %632 = vmatprep.subr.mxu0 0.0
    %633 = vmatpush2.msra.mxu0 %v557
    %634 = vmatprep.subr.mxu0 0.0
    %635 = vmatpush2.msra.mxu0 %v556
    %636 = vmatprep.subr.mxu0 0.0
    %637 = vmatpush2.msra.mxu0 %v555
    %638 = vmatprep.subr.mxu0 0.0
    %639 = vmatpush2.msra.mxu0 %v554
    %640 = vmatprep.subr.mxu0 0.0
    %641 = vmatpush2.msra.mxu0 %v553
    %642 = vmatprep.subr.mxu0 0.0
    %643 = vmatpush2.msra.mxu0 %v552
    %644 = vmatprep.subr.mxu0 0.0
    %645 = vmatpush2.msra.mxu0 %v551
    %646 = vmatprep.subr.mxu0 0.0
    %647 = vmatpush2.msra.mxu0 %v550
    %648 = vmatprep.subr.mxu0 0.0
    %649 = vmatpush2.msra.mxu0 %v549
    %650 = vmatprep.subr.mxu0 0.0
    %651 = vmatpush2.msra.mxu0 %v548
    %652 = vmatprep.subr.mxu0 0.0
    %653 = vmatpush2.msra.mxu0 %v547
    %654 = vmatprep.subr.mxu0 0.0
    %655 = vmatpush2.msra.mxu0 %v546
    %656 = vmatprep.subr.mxu0 0.0
    %657 = vmatpush2.msra.mxu0 %v545
    %658 = vmatprep.subr.mxu0 0.0
    %659 = vmatpush2.msra.mxu0 %v544
    %660 = vmatprep.subr.mxu0 0.0
    %661 = vmatpush2.msra.mxu0 %v543
    %662 = vmatprep.mubr.f32.mxu0 %v524
    %663 = vmatmul.mubr.f32.gmra.mxu0 %v523
    %v664 = vpop.f32.mrf.mxu0
    %v665 = vadd.f32 %v596, %v664
    %v666 = vpop.f32.mrf.mxu0
    %667 = vdwg.mxu0
    %668 = vmatprep.subr.mxu0 0.0
    %669 = vmatpush1.msra.mxu0 %v574
    %670 = vmatprep.subr.mxu0 0.0
    %671 = vmatpush1.msra.mxu0 %v573
    %672 = vmatprep.subr.mxu0 0.0
    %673 = vmatpush1.msra.mxu0 %v572
    %674 = vmatprep.subr.mxu0 0.0
    %675 = vmatpush1.msra.mxu0 %v571
    %676 = vmatprep.subr.mxu0 0.0
    %677 = vmatpush1.msra.mxu0 %v570
    %678 = vmatprep.subr.mxu0 0.0
    %679 = vmatpush1.msra.mxu0 %v569
    %680 = vmatprep.subr.mxu0 0.0
    %681 = vmatpush1.msra.mxu0 %v568
    %682 = vmatprep.subr.mxu0 0.0
    %683 = vmatpush1.msra.mxu0 %v567
    %684 = vmatprep.subr.mxu0 0.0
    %685 = vmatpush1.msra.mxu0 %v566
    %686 = vmatprep.subr.mxu0 0.0
    %687 = vmatpush1.msra.mxu0 %v565
    %688 = vmatprep.subr.mxu0 0.0
    %689 = vmatpush1.msra.mxu0 %v564
    %690 = vmatprep.subr.mxu0 0.0
    %691 = vmatpush1.msra.mxu0 %v563
    %692 = vmatprep.subr.mxu0 0.0
    %693 = vmatpush1.msra.mxu0 %v562
    %694 = vmatprep.subr.mxu0 0.0
    %695 = vmatpush1.msra.mxu0 %v561
    %696 = vmatprep.subr.mxu0 0.0
    %697 = vmatpush1.msra.mxu0 %v560
    %698 = vmatprep.subr.mxu0 0.0
    %699 = vmatpush1.msra.mxu0 %v559
    %700 = vmatprep.subr.mxu0 0.0
    %701 = vmatpush2.msra.mxu0 %v590
    %702 = vmatprep.subr.mxu0 0.0
    %703 = vmatpush2.msra.mxu0 %v589
    %704 = vmatprep.subr.mxu0 0.0
    %705 = vmatpush2.msra.mxu0 %v588
    %706 = vmatprep.subr.mxu0 0.0
    %707 = vmatpush2.msra.mxu0 %v587
    %708 = vmatprep.subr.mxu0 0.0
    %709 = vmatpush2.msra.mxu0 %v586
    %710 = vmatprep.subr.mxu0 0.0
    %711 = vmatpush2.msra.mxu0 %v585
    %712 = vmatprep.subr.mxu0 0.0
    %713 = vmatpush2.msra.mxu0 %v584
    %714 = vmatprep.subr.mxu0 0.0
    %715 = vmatpush2.msra.mxu0 %v583
    %716 = vmatprep.subr.mxu0 0.0
    %717 = vmatpush2.msra.mxu0 %v582
    %718 = vmatprep.subr.mxu0 0.0
    %719 = vmatpush2.msra.mxu0 %v581
    %720 = vmatprep.subr.mxu0 0.0
    %721 = vmatpush2.msra.mxu0 %v580
    %722 = vmatprep.subr.mxu0 0.0
    %723 = vmatpush2.msra.mxu0 %v579
    %724 = vmatprep.subr.mxu0 0.0
    %725 = vmatpush2.msra.mxu0 %v578
    %726 = vmatprep.subr.mxu0 0.0
    %727 = vmatpush2.msra.mxu0 %v577
    %728 = vmatprep.subr.mxu0 0.0
    %729 = vmatpush2.msra.mxu0 %v576
    %730 = vmatprep.subr.mxu0 0.0
    %731 = vmatpush2.msra.mxu0 %v575
    %732 = vmatprep.mubr.f32.mxu0 %v526
    %733 = vmatmul.mubr.f32.gmra.mxu0 %v525
    %v734 = vpop.f32.mrf.mxu0
    %v735 = vadd.f32 %v665, %v734
    %v736 = vpop.f32.mrf.mxu0
    %737 = vdwg.mxu0
    %v738 = vmax.f32 %v735, 0.0
    %v739 = vld [vmem:[%s7] sm:$0xff]
    %v740 = vmul.f32 %v738, %v739
    %v741 = vld [vmem:[#allocation13] sm:$0xff]
    %v742 = vld [vmem:[#allocation13 + $0x8] sm:$0xff]
    %v743 = vld [vmem:[#allocation13 + $0x10] sm:$0xff]
    %v744 = vld [vmem:[#allocation13 + $0x18] sm:$0xff]
    %v745 = vld [vmem:[#allocation13 + $0x20] sm:$0xff]
    %v746 = vld [vmem:[#allocation13 + $0x28] sm:$0xff]
    %v747 = vld [vmem:[#allocation13 + $0x30] sm:$0xff]
    %v748 = vld [vmem:[#allocation13 + $0x38] sm:$0xff]
    %v749 = vld [vmem:[#allocation13 + $0x40] sm:$0xff]
    %v750 = vld [vmem:[#allocation13 + $0x48] sm:$0xff]
    %v751 = vld [vmem:[#allocation13 + $0x50] sm:$0xff]
    %v752 = vld [vmem:[#allocation13 + $0x58] sm:$0xff]
    %v753 = vld [vmem:[#allocation13 + $0x60] sm:$0xff]
    %v754 = vld [vmem:[#allocation13 + $0x68] sm:$0xff]
    %v755 = vld [vmem:[#allocation13 + $0x70] sm:$0xff]
    %v756 = vld [vmem:[#allocation13 + $0x78] sm:$0xff]
    %v757 = vld [vmem:[%s9] sm:$0x1]
    %v759 = vlaneseq
    %v760 = vshrl.u32 %v759, 7
    %v761 = vsub.s32 0, %v760
    %v762 = vrot.slane %v757, %v761
    %764 = vmatprep.subr.mxu0 0.0
    %765 = vmatpush1.msra.mxu0 %v756
    %766 = vmatprep.subr.mxu0 0.0
    %767 = vmatpush1.msra.mxu0 %v755
    %768 = vmatprep.subr.mxu0 0.0
    %769 = vmatpush1.msra.mxu0 %v754
    %770 = vmatprep.subr.mxu0 0.0
    %771 = vmatpush1.msra.mxu0 %v753
    %772 = vmatprep.subr.mxu0 0.0
    %773 = vmatpush1.msra.mxu0 %v752
    %774 = vmatprep.subr.mxu0 0.0
    %775 = vmatpush1.msra.mxu0 %v751
    %776 = vmatprep.subr.mxu0 0.0
    %777 = vmatpush1.msra.mxu0 %v750
    %778 = vmatprep.subr.mxu0 0.0
    %779 = vmatpush1.msra.mxu0 %v749
    %780 = vmatprep.subr.mxu0 0.0
    %781 = vmatpush1.msra.mxu0 %v748
    %782 = vmatprep.subr.mxu0 0.0
    %783 = vmatpush1.msra.mxu0 %v747
    %784 = vmatprep.subr.mxu0 0.0
    %785 = vmatpush1.msra.mxu0 %v746
    %786 = vmatprep.subr.mxu0 0.0
    %787 = vmatpush1.msra.mxu0 %v745
    %788 = vmatprep.subr.mxu0 0.0
    %789 = vmatpush1.msra.mxu0 %v744
    %790 = vmatprep.subr.mxu0 0.0
    %791 = vmatpush1.msra.mxu0 %v743
    %792 = vmatprep.subr.mxu0 0.0
    %793 = vmatpush1.msra.mxu0 %v742
    %794 = vmatprep.subr.mxu0 0.0
    %795 = vmatpush1.msra.mxu0 %v741
    %796 = vmatprep.subr.mxu0 0.0
    %797 = vmatpush2.msra.mxu0 0.0
    %798 = vmatprep.subr.mxu0 0.0
    %799 = vmatpush2.msra.mxu0 0.0
    %800 = vmatprep.subr.mxu0 0.0
    %801 = vmatpush2.msra.mxu0 0.0
    %802 = vmatprep.subr.mxu0 0.0
    %803 = vmatpush2.msra.mxu0 0.0
    %804 = vmatprep.subr.mxu0 0.0
    %805 = vmatpush2.msra.mxu0 0.0
    %806 = vmatprep.subr.mxu0 0.0
    %807 = vmatpush2.msra.mxu0 0.0
    %808 = vmatprep.subr.mxu0 0.0
    %809 = vmatpush2.msra.mxu0 0.0
    %810 = vmatprep.subr.mxu0 0.0
    %811 = vmatpush2.msra.mxu0 0.0
    %812 = vmatprep.subr.mxu0 0.0
    %813 = vmatpush2.msra.mxu0 0.0
    %814 = vmatprep.subr.mxu0 0.0
    %815 = vmatpush2.msra.mxu0 0.0
    %816 = vmatprep.subr.mxu0 0.0
    %817 = vmatpush2.msra.mxu0 0.0
    %818 = vmatprep.subr.mxu0 0.0
    %819 = vmatpush2.msra.mxu0 0.0
    %820 = vmatprep.subr.mxu0 0.0
    %821 = vmatpush2.msra.mxu0 0.0
    %822 = vmatprep.subr.mxu0 0.0
    %823 = vmatpush2.msra.mxu0 0.0
    %824 = vmatprep.subr.mxu0 0.0
    %825 = vmatpush2.msra.mxu0 0.0
    %826 = vmatprep.subr.mxu0 0.0
    %827 = vmatpush2.msra.mxu0 0.0
    %828 = vmatprep.mubr.f32.mxu0 0.0
    %829 = vmatmul.mubr.f32.gmra.mxu0 %v740
    %v830 = vpop.f32.mrf.mxu0
    %v831 = vadd.f32 %v762, %v830
    %v832 = vpop.f32.mrf.mxu0
    %833 = vdwg.mxu0
    %834 = vst [vmem:[#allocation14] sm:$0xff] %v831
    // Predicated region
    $region70: #{tpu_custom_call.1} parent=1 // pred_check
      _
    $region71: #{tpu_custom_call.1} parent=1 // pred_check_branch
      %836 = sbr.rel (0) target = $region73
    $region72: #{tpu_custom_call.1} parent=1 // pred_region
      %s838 = ssub.s32 128, 128
      %839 = vsyncadd [#allocation4], %s838
      %s841 = sshll.u32 [#allocation14], 4
      %s842 = int_to_ptr.vmem [resolvable:$true] %s841
      %844 = dma.vmem_to_hbm [thread:$0]  %s842, 128, %s10, [#allocation4]
    $region73: #{tpu_custom_call.1} parent=1 // pred_fallthru
      _
    // Predicated region
    $region74: #{tpu_custom_call.1} parent=1 // pred_check
      _
    $region75: #{tpu_custom_call.1} parent=1 // pred_check_branch
      %846 = sbr.rel (0) target = $region77
    $region76: #{tpu_custom_call.1} parent=1 // pred_region
      %847 = dma.done [#allocation4], 128
    $region77: #{tpu_custom_call.1} parent=1 // pred_fallthru
      _
    %848 = vsyncpa [#allocation3], 1
    %849 = vsyncpa [#allocation6], 1
    %850 = vsyncpa [#allocation9], 1
    %851 = vsyncpa [#allocation12], 1
    %852 = vsyncpa [#allocation4], 1

</llo_original>
